<compile_context>
chip_gen: v7x
topology: tpu7x:2x2x1
jax: 0.10.0
libtpu: 0.0.40
codegen_flags: <defaults>
</compile_context>

<pallas_src>
import jax
import jax.numpy as jnp
from jax import lax
from jax.experimental import pallas as pl
from jax.experimental.pallas import tpu as pltpu

IGNORE_INDEX = 255
SMOOTH = 1e-6
CE_WEIGHT = 0.5
DICE_WEIGHT = 0.5


def _make_stats_kernel(c, hw, tile_p, tiles_per_split, needs_tail_mask):
    def kernel(x_ref, t_ref, out_ref, acc_ref):
        # x_ref: (C, TILE_P) logits, t_ref: (1, TILE_P) int labels
        # out_ref: (C, 4) per-(batch, split) stats, acc_ref: (C, 4) accumulator
        p = pl.program_id(2)

        @pl.when(p == 0)
        def _init():
            acc_ref[...] = jnp.zeros_like(acc_ref)

        x = x_ref[...].astype(jnp.float32)            # (C, TILE_P)
        t = t_ref[...].astype(jnp.int32)              # (1, TILE_P)

        valid = t != IGNORE_INDEX                     # (1, TILE_P) bool
        if needs_tail_mask:
            s = pl.program_id(1)
            tile = s * tiles_per_split + p            # unclamped logical tile index
            lane = lax.broadcasted_iota(jnp.int32, (1, tile_p), 1)
            in_bounds = (tile * tile_p + lane) < hw
            valid = jnp.logical_and(valid, in_bounds)
            x = jnp.where(in_bounds, x, 0.0)          # scrub padded / clamped garbage
        validf = valid.astype(jnp.float32)            # (1, TILE_P)

        class_ids = lax.broadcasted_iota(jnp.int32, (c, tile_p), 0)
        onehot = class_ids == t                       # bool (C, TILE_P), stays bool

        # numerically-stable softmax / log-sum-exp over the class (sublane) axis
        m = jnp.max(x, axis=0, keepdims=True)         # (1, TILE_P)
        ex = jnp.exp(x - m)                           # (C, TILE_P)  (EUP)
        denom = jnp.sum(ex, axis=0, keepdims=True)    # (1, TILE_P)
        r = pl.reciprocal(denom, approx=True)         # EUP vrcp
        r = r * (2.0 - denom * r)                     # one Newton step -> ~f32 exact
        scale = validf * r                            # valid mask folded into the scale
        pm = ex * scale                               # masked probs (C, TILE_P)

        lse = m + jnp.log(denom)                      # (1, TILE_P)
        x_t = jnp.sum(jnp.where(onehot, x, 0.0), axis=0, keepdims=True)
        ce_row = (lse - x_t) * validf                 # (1, TILE_P) CE per valid pixel

        # per-class lane (pixel) reductions
        inter = jnp.sum(jnp.where(onehot, pm, 0.0), axis=1, keepdims=True)      # (C,1)
        psum = jnp.sum(pm, axis=1, keepdims=True)                               # (C,1)
        tsum = jnp.sum(jnp.where(onehot, validf, 0.0), axis=1, keepdims=True)   # (C,1)
        ce = jnp.sum(ce_row, axis=1, keepdims=True)                             # (1,1)

        acc_ref[:, 0:1] += inter      # intersection
        acc_ref[:, 1:2] += psum       # pred sum
        acc_ref[:, 2:3] += tsum       # target sum (== valid-pixel count per class)
        acc_ref[0:1, 3:4] += ce       # CE sum (single scalar slot)

        @pl.when(p == pl.num_programs(2) - 1)
        def _flush():
            out_ref[...] = acc_ref[...]

    return kernel


def combined_loss(preds, targets, *, tile_p=None):
    """preds: (N, C, H, W) float logits (f32 or bf16); targets: (N, H, W) int labels
    (any integer dtype, e.g. uint8/int32).  tile_p optionally overrides the
    auto-chosen pixel tile (for testing)."""
    n, c, h, w = preds.shape
    hw = h * w

    x = preds.reshape(n, c, hw)          # free reshape: classes on sublanes, pixels on lanes
    t = targets.reshape(n, 1, hw)        # keep native (narrow) dtype; upcast in-kernel

    # Generation-aware VMEM budget (v7x: 64 MiB physical, v5e/v6e: 128 MiB).
    try:
        vmem_cap = pltpu.get_tpu_info().vmem_capacity_bytes
    except Exception:
        vmem_cap = 64 * 1024 * 1024
    vmem_budget = int(min(vmem_cap * 0.7, 96 * 1024 * 1024))

    x_isize = x.dtype.itemsize
    t_isize = t.dtype.itemsize

    # Adaptive pixel tile: ~2 MiB logits block, capped by VMEM and by H*W.
    if hw < 128:
        tp = hw                                       # block equals full dim
    else:
        if tile_p is None:
            tp = (2 * 1024 * 1024) // (c * x_isize)
        else:
            tp = tile_p
        # rough VMEM per pixel-column: 2x double-buffered inputs + ~8 f32 temporaries
        per_col = c * (2 * x_isize + 8 * 4) + 2 * t_isize + 8
        tp = min(tp, vmem_budget // per_col)
        tp = (tp // 128) * 128
        tp = max(128, min(tp, (hw // 128) * 128))
    tp = int(tp)

    tiles_total = -(-hw // tp)
    n_splits = 2 if tiles_total >= 2 else 1           # megacore-friendly on v7x
    tiles_per_split = -(-tiles_total // n_splits)
    padded_tiles = n_splits * tiles_per_split
    needs_tail_mask = (padded_tiles * tp != hw)
    last_tile = tiles_total - 1

    def tile_idx(s, p):
        idx = s * tiles_per_split + p
        if padded_tiles != tiles_total:
            # clamp padded grid steps onto a real (in-bounds) block; the kernel's
            # global-index mask zeroes their contribution.
            idx = jnp.minimum(idx, last_tile)
        return idx

    kernel = _make_stats_kernel(c, hw, tp, tiles_per_split, needs_tail_mask)

    stats = pl.pallas_call(
        kernel,
        out_shape=jax.ShapeDtypeStruct((n, n_splits, c, 4), jnp.float32),
        grid_spec=pltpu.PrefetchScalarGridSpec(
            num_scalar_prefetch=0,
            grid=(n, n_splits, tiles_per_split),
            in_specs=[
                pl.BlockSpec((None, c, tp), lambda i, s, p: (i, 0, tile_idx(s, p))),
                pl.BlockSpec((None, 1, tp), lambda i, s, p: (i, 0, tile_idx(s, p))),
            ],
            out_specs=pl.BlockSpec((None, None, c, 4), lambda i, s, p: (i, s, 0, 0)),
            scratch_shapes=[pltpu.VMEM((c, 4), jnp.float32)],
        ),
        compiler_params=pltpu.CompilerParams(
            dimension_semantics=("parallel", "parallel", "arbitrary"),
            vmem_limit_bytes=vmem_budget,
        ),
    )(x, t)

    totals = jnp.sum(stats, axis=(0, 1))               # (C, 4) reduce partials
    inter = totals[:, 0]
    psum = totals[:, 1]
    tsum = totals[:, 2]
    ce_sum = totals[0, 3]

    cnt = jnp.sum(tsum)                                 # number of valid pixels
    ce = ce_sum / cnt                                   # NaN if all ignored (matches PyTorch)
    dice = (2.0 * inter + SMOOTH) / (psum + tsum + SMOOTH)
    dice_loss = 1.0 - jnp.mean(dice)
    return CE_WEIGHT * ce + DICE_WEIGHT * dice_loss


def _reference_loss(preds, targets):
    # pure-JAX reference reproducing the PyTorch semantics (for sanity check)
    n, c, h, w = preds.shape
    p = jax.nn.softmax(preds.astype(jnp.float32), axis=1)
    valid = targets != IGNORE_INDEX
    onehot = jnp.transpose(
        jax.nn.one_hot(jnp.where(valid, targets, 0), c, dtype=jnp.float32)
        * valid[..., None].astype(jnp.float32), (0, 3, 1, 2))
    mask = valid[:, None, :, :].astype(jnp.float32)
    pm = p * mask
    inter = jnp.sum(pm * onehot, axis=(0, 2, 3))
    union = jnp.sum(pm, axis=(0, 2, 3)) + jnp.sum(onehot, axis=(0, 2, 3))
    dice = 1.0 - jnp.mean((2.0 * inter + SMOOTH) / (union + SMOOTH))
    logp = jax.nn.log_softmax(preds.astype(jnp.float32), axis=1)
    tgt = jnp.where(valid, targets, 0)
    picked = jnp.take_along_axis(logp, tgt[:, None, :, :], axis=1)[:, 0]
    ce = -jnp.sum(picked * valid.astype(jnp.float32)) / jnp.sum(valid)
    return CE_WEIGHT * ce + DICE_WEIGHT * dice


if __name__ == "__main__":
    key = jax.random.PRNGKey(0)

    def _make_inputs(k, n, c, h, w):
        k1, k2, k3 = jax.random.split(k, 3)
        preds = jax.random.normal(k1, (n, c, h, w), dtype=jnp.float32)
        targets = jax.random.randint(k2, (n, h, w), 0, c, dtype=jnp.int32)
        ignore = jax.random.uniform(k3, (n, h, w)) < 0.1
        targets = jnp.where(ignore, IGNORE_INDEX, targets)
        return preds, targets

    k_a, k_b, k_c = jax.random.split(key, 3)

    # main case: N=2, C=4, H=W=16 (exact tiling, single split)
    preds, targets = _make_inputs(k_a, 2, 4, 16, 16)
    out = jax.block_until_ready(combined_loss(preds, targets))
    ref = _reference_loss(preds, targets)
    assert jnp.allclose(out, ref, rtol=1e-5, atol=1e-5), (out, ref)

    # ragged case: H*W = 144, tp = 128 -> 2 tiles, 2-way split + in-kernel tail mask
    preds2, targets2 = _make_inputs(k_b, 1, 3, 12, 12)
    out2 = jax.block_until_ready(combined_loss(preds2, targets2))
    ref2 = _reference_loss(preds2, targets2)
    assert jnp.allclose(out2, ref2, rtol=1e-5, atol=1e-5), (out2, ref2)

    # odd tile count: H*W = 324, forced tp = 128 -> 3 tiles over a 2x2 padded grid
    # (exercises the clamped, fully-masked padded tile)
    preds3, targets3 = _make_inputs(k_c, 1, 5, 18, 18)
    out3 = jax.block_until_ready(combined_loss(preds3, targets3, tile_p=128))
    ref3 = _reference_loss(preds3, targets3)
    assert jnp.allclose(out3, ref3, rtol=1e-5, atol=1e-5), (out3, ref3)

    print("KERNEL_OK")
</pallas_src>

<mosaic_0001>
module attributes {stable_mosaic.version = 11 : i64} {
  func.func @kernel(%arg0: i32, %arg1: i32, %arg2: i32, %arg3: memref<1x4x256xf32, #tpu.memory_space<vmem>>, %arg4: memref<1x1x256xi32, #tpu.memory_space<vmem>>, %arg5: memref<1x1x4x4xf32, #tpu.memory_space<vmem>>, %arg6: memref<4x4xf32, #tpu.memory_space<vmem>>) attributes {dimension_semantics = [#tpu.dimension_semantics<parallel>, #tpu.dimension_semantics<parallel>, #tpu.dimension_semantics<arbitrary>], iteration_bounds = array<i64: 2, 1, 1>, scalar_prefetch = 0 : i64, scratch_operands = 1 : i64, tpu.core_type = #tpu.core_type<tc>, window_params = [{transform_indices = @transform_0, window_bounds = array<i64: 1, 4, 256>}, {transform_indices = @transform_1, window_bounds = array<i64: 1, 1, 256>}, {transform_indices = @transform_2, window_bounds = array<i64: 1, 1, 4, 4>}]} {
    %c0_i32 = arith.constant 0 : i32
    %0 = arith.cmpi eq, %arg2, %c0_i32 : i32
    %1 = arith.extui %0 : i1 to i32
    %c0_i32_0 = arith.constant 0 : i32
    %2 = arith.cmpi ne, %1, %c0_i32_0 : i32
    scf.if %2 {
      %cst_31 = arith.constant 0.000000e+00 : f32
      %66 = vector.broadcast %cst_31 : f32 to vector<4x4xf32>
      %c0_32 = arith.constant 0 : index
      %c0_33 = arith.constant 0 : index
      %67 = vector.load %arg6[%c0_32, %c0_33] : memref<4x4xf32, #tpu.memory_space<vmem>>, vector<4x4xf32>
      tpu.vector_store %arg6[%c0_32, %c0_33], %66 {strides = array<i32>} : memref<4x4xf32, #tpu.memory_space<vmem>>, vector<4x4xf32>,
    } else {
    }
    %c0 = arith.constant 0 : index
    %c0_1 = arith.constant 0 : index
    %c0_2 = arith.constant 0 : index
    %3 = vector.load %arg3[%c0, %c0_1, %c0_2] : memref<1x4x256xf32, #tpu.memory_space<vmem>>, vector<1x4x256xf32>
    %4 = vector.shape_cast %3 : vector<1x4x256xf32> to vector<4x256xf32>
    %c0_3 = arith.constant 0 : index
    %c0_4 = arith.constant 0 : index
    %c0_5 = arith.constant 0 : index
    %5 = vector.load %arg4[%c0_3, %c0_4, %c0_5] : memref<1x1x256xi32, #tpu.memory_space<vmem>>, vector<1x1x256xi32>
    %6 = vector.shape_cast %5 : vector<1x1x256xi32> to vector<1x256xi32>
    %c255_i32 = arith.constant 255 : i32
    %7 = vector.broadcast %c255_i32 : i32 to vector<1x256xi32>
    %8 = arith.cmpi ne, %6, %7 : vector<1x256xi32>
    %9 = arith.extui %8 : vector<1x256xi1> to vector<1x256xi32>
    %10 = arith.sitofp %9 : vector<1x256xi32> to vector<1x256xf32>
    %11 = tpu.iota {dimensions = array<i32: 0>} : vector<4x256xi32>
    %12 = vector.broadcast %6 : vector<1x256xi32> to vector<4x256xi32>
    %13 = arith.cmpi eq, %11, %12 : vector<4x256xi32>
    %cst = arith.constant dense<0xFF800000> : vector<256xf32>
    %14 = vector.multi_reduction <maximumf>, %4, %cst [0] : vector<4x256xf32> to vector<256xf32>
    %15 = vector.shape_cast %14 : vector<256xf32> to vector<1x256xf32>
    %16 = vector.broadcast %15 : vector<1x256xf32> to vector<4x256xf32>
    %17 = arith.subf %4, %16 : vector<4x256xf32>
    %18 = math.exp %17 : vector<4x256xf32>
    %cst_6 = arith.constant dense<0.000000e+00> : vector<256xf32>
    %19 = vector.multi_reduction <add>, %18, %cst_6 [0] : vector<4x256xf32> to vector<256xf32>
    %20 = vector.shape_cast %19 : vector<256xf32> to vector<1x256xf32>
    %21 = tpu.reciprocal %20 {approx = true} : vector<1x256xf32> -> vector<1x256xf32>
    %22 = arith.mulf %20, %21 : vector<1x256xf32>
    %cst_7 = arith.constant 2.000000e+00 : f32
    %23 = vector.broadcast %cst_7 : f32 to vector<1x256xf32>
    %24 = arith.subf %23, %22 : vector<1x256xf32>
    %25 = arith.mulf %21, %24 : vector<1x256xf32>
    %26 = arith.mulf %10, %25 : vector<1x256xf32>
    %27 = vector.broadcast %26 : vector<1x256xf32> to vector<4x256xf32>
    %28 = arith.mulf %18, %27 : vector<4x256xf32>
    %29 = math.log %20 : vector<1x256xf32>
    %30 = arith.addf %15, %29 : vector<1x256xf32>
    %cst_8 = arith.constant 0.000000e+00 : f32
    %31 = vector.broadcast %cst_8 : f32 to vector<4x256xf32>
    %32 = arith.select %13, %4, %31 : vector<4x256xi1>, vector<4x256xf32>
    %cst_9 = arith.constant dense<0.000000e+00> : vector<256xf32>
    %33 = vector.multi_reduction <add>, %32, %cst_9 [0] : vector<4x256xf32> to vector<256xf32>
    %34 = vector.shape_cast %33 : vector<256xf32> to vector<1x256xf32>
    %35 = arith.subf %30, %34 : vector<1x256xf32>
    %36 = arith.mulf %35, %10 : vector<1x256xf32>
    %cst_10 = arith.constant 0.000000e+00 : f32
    %37 = vector.broadcast %cst_10 : f32 to vector<4x256xf32>
    %38 = arith.select %13, %28, %37 : vector<4x256xi1>, vector<4x256xf32>
    %cst_11 = arith.constant dense<0.000000e+00> : vector<4xf32>
    %39 = vector.multi_reduction <add>, %38, %cst_11 [1] : vector<4x256xf32> to vector<4xf32>
    %40 = vector.shape_cast %39 : vector<4xf32> to vector<4x1xf32>
    %cst_12 = arith.constant dense<0.000000e+00> : vector<4xf32>
    %41 = vector.multi_reduction <add>, %28, %cst_12 [1] : vector<4x256xf32> to vector<4xf32>
    %42 = vector.shape_cast %41 : vector<4xf32> to vector<4x1xf32>
    %cst_13 = arith.constant 0.000000e+00 : f32
    %43 = vector.shape_cast %10 : vector<1x256xf32> to vector<1x256xf32>
    %44 = vector.broadcast %43 : vector<1x256xf32> to vector<4x256xf32>
    %45 = vector.broadcast %cst_13 : f32 to vector<4x256xf32>
    %46 = arith.select %13, %44, %45 : vector<4x256xi1>, vector<4x256xf32>
    %cst_14 = arith.constant dense<0.000000e+00> : vector<4xf32>
    %47 = vector.multi_reduction <add>, %46, %cst_14 [1] : vector<4x256xf32> to vector<4xf32>
    %48 = vector.shape_cast %47 : vector<4xf32> to vector<4x1xf32>
    %cst_15 = arith.constant dense<0.000000e+00> : vector<1xf32>
    %49 = vector.multi_reduction <add>, %36, %cst_15 [1] : vector<1x256xf32> to vector<1xf32>
    %50 = vector.shape_cast %49 : vector<1xf32> to vector<1x1xf32>
    %c0_16 = arith.constant 0 : index
    %c0_17 = arith.constant 0 : index
    %51 = vector.load %arg6[%c0_16, %c0_17] : memref<4x4xf32, #tpu.memory_space<vmem>>, vector<4x1xf32>
    %52 = arith.addf %51, %40 : vector<4x1xf32>
    %c0_18 = arith.constant 0 : index
    %c0_19 = arith.constant 0 : index
    %53 = vector.load %arg6[%c0_18, %c0_19] : memref<4x4xf32, #tpu.memory_space<vmem>>, vector<4x1xf32>
    tpu.vector_store %arg6[%c0_18, %c0_19], %52 {strides = array<i32>} : memref<4x4xf32, #tpu.memory_space<vmem>>, vector<4x1xf32>,
    %c0_20 = arith.constant 0 : index
    %c1 = arith.constant 1 : index
    %54 = vector.load %arg6[%c0_20, %c1] : memref<4x4xf32, #tpu.memory_space<vmem>>, vector<4x1xf32>
    %55 = arith.addf %54, %42 : vector<4x1xf32>
    %c0_21 = arith.constant 0 : index
    %c1_22 = arith.constant 1 : index
    %56 = vector.load %arg6[%c0_21, %c1_22] : memref<4x4xf32, #tpu.memory_space<vmem>>, vector<4x1xf32>
    tpu.vector_store %arg6[%c0_21, %c1_22], %55 {strides = array<i32>} : memref<4x4xf32, #tpu.memory_space<vmem>>, vector<4x1xf32>,
    %c0_23 = arith.constant 0 : index
    %c2 = arith.constant 2 : index
    %57 = vector.load %arg6[%c0_23, %c2] : memref<4x4xf32, #tpu.memory_space<vmem>>, vector<4x1xf32>
    %58 = arith.addf %57, %48 : vector<4x1xf32>
    %c0_24 = arith.constant 0 : index
    %c2_25 = arith.constant 2 : index
    %59 = vector.load %arg6[%c0_24, %c2_25] : memref<4x4xf32, #tpu.memory_space<vmem>>, vector<4x1xf32>
    tpu.vector_store %arg6[%c0_24, %c2_25], %58 {strides = array<i32>} : memref<4x4xf32, #tpu.memory_space<vmem>>, vector<4x1xf32>,
    %c0_26 = arith.constant 0 : index
    %c3 = arith.constant 3 : index
    %60 = vector.load %arg6[%c0_26, %c3] : memref<4x4xf32, #tpu.memory_space<vmem>>, vector<1x1xf32>
    %61 = arith.addf %60, %50 : vector<1x1xf32>
    %c0_27 = arith.constant 0 : index
    %c3_28 = arith.constant 3 : index
    %62 = vector.load %arg6[%c0_27, %c3_28] : memref<4x4xf32, #tpu.memory_space<vmem>>, vector<1x1xf32>
    tpu.vector_store %arg6[%c0_27, %c3_28], %61 {strides = array<i32>} : memref<4x4xf32, #tpu.memory_space<vmem>>, vector<1x1xf32>,
    %c0_i32_29 = arith.constant 0 : i32
    %63 = arith.cmpi eq, %arg2, %c0_i32_29 : i32
    %64 = arith.extui %63 : i1 to i32
    %c0_i32_30 = arith.constant 0 : i32
    %65 = arith.cmpi ne, %64, %c0_i32_30 : i32
    scf.if %65 {
      %c0_31 = arith.constant 0 : index
      %c0_32 = arith.constant 0 : index
      %66 = vector.load %arg6[%c0_31, %c0_32] : memref<4x4xf32, #tpu.memory_space<vmem>>, vector<4x4xf32>
      %c0_33 = arith.constant 0 : index
      %c0_34 = arith.constant 0 : index
      %c0_35 = arith.constant 0 : index
      %c0_36 = arith.constant 0 : index
      %67 = vector.load %arg5[%c0_33, %c0_34, %c0_35, %c0_36] : memref<1x1x4x4xf32, #tpu.memory_space<vmem>>, vector<1x1x4x4xf32>
      %68 = vector.shape_cast %67 : vector<1x1x4x4xf32> to vector<4x4xf32>
      %69 = vector.shape_cast %66 : vector<4x4xf32> to vector<1x1x4x4xf32>
      tpu.vector_store %arg5[%c0_33, %c0_34, %c0_35, %c0_36], %69 {strides = array<i32>} : memref<1x1x4x4xf32, #tpu.memory_space<vmem>>, vector<1x1x4x4xf32>,
    } else {
    }
    return
  }
  func.func @transform_0(%arg0: i32, %arg1: i32, %arg2: i32) -> (i32, i32, i32) {
    %c1_i32 = arith.constant 1 : i32
    %0 = arith.muli %arg1, %c1_i32 : i32
    %1 = arith.addi %0, %arg2 : i32
    %c0_i32 = arith.constant 0 : i32
    %c0_i32_0 = arith.constant 0 : i32
    return %arg0, %c0_i32, %1 : i32, i32, i32
  }
  func.func @transform_1(%arg0: i32, %arg1: i32, %arg2: i32) -> (i32, i32, i32) {
    %c1_i32 = arith.constant 1 : i32
    %0 = arith.muli %arg1, %c1_i32 : i32
    %1 = arith.addi %0, %arg2 : i32
    %c0_i32 = arith.constant 0 : i32
    %c0_i32_0 = arith.constant 0 : i32
    return %arg0, %c0_i32, %1 : i32, i32, i32
  }
  func.func @transform_2(%arg0: i32, %arg1: i32, %arg2: i32) -> (i32, i32, i32, i32) {
    %c0_i32 = arith.constant 0 : i32
    %c0_i32_0 = arith.constant 0 : i32
    %c0_i32_1 = arith.constant 0 : i32
    return %arg0, %arg1, %c0_i32, %c0_i32_0 : i32, i32, i32, i32
  }
}

</mosaic_0001>

<llo_original>
// kernel: tpu_custom_call.1
$region0: #{tpu_custom_call.1}
  #allocation0 [shape = 'u32[]', space=smem, size = 0x4, offset = 0x4, fixed_abs, tag = 'smem constant byte address 0x4 - core index']
  #allocation1 [shape = 'u32[144,128]{1,0:T(1,128)}', space=vmem, size = 0x12000, scoped, tag = 'internal scratch']
  #allocation2 [shape = 'f32[4,4]{1,0:T(4,128)}', space=vmem, size = 0x800, scoped, tag = 'scratch operand']
  %s0 = inlined_call_operand.hbm [shape: f32[2,4,256], index: 0, kind: input, shape index: {}]
  %s1 = inlined_call_operand.hbm [shape: s32[2,1,256], index: 1, kind: input, shape index: {}]
  %s2 = inlined_call_operand.hbm [shape: f32[2,1,4,4], index: 2, kind: output, shape index: {}]
  %s3 = sld [smem:[#allocation0]]
  $region57: #{tpu_custom_call.1} parent=0
    _
  %s5 = ssub.s32 1, %s3
  %s6 = scalar_select 0, %s5, %s3
  $region1: #{tpu_custom_call.1} parent=0
    #allocation3 [shape = 'u8[8192]{0}', space=vmem, size = 0x2000, scoped, tag = 'input window, operand 0']
    #allocation4 [shape = 's32[2]{0}', space=sflag, size = 0x8, scoped, tag = 'scoped memory for tpu_custom_call.1']
    #allocation5 [shape = 's32[2]{0}', space=sflag, size = 0x8, scoped, tag = 'scoped memory for tpu_custom_call.1']
    #allocation6 [shape = 'u8[2048]{0}', space=vmem, size = 0x800, scoped, tag = 'input window, operand 1']
    #allocation7 [shape = 's32[2]{0}', space=sflag, size = 0x8, scoped, tag = 'scoped memory for tpu_custom_call.1']
    #allocation8 [shape = 'u8[4096]{0}', space=vmem, size = 0x1000, scoped, tag = 'output window, operand 0']
    %7 = vsyncpa [#allocation4], 0
    %s8 = scalar_lea.sflag [#allocation4], 1
    %9 = vsyncpa %s8, 0
    %10 = vsyncpa [#allocation7], 0
    %s11 = scalar_lea.sflag [#allocation7], 1
    %12 = vsyncpa %s11, 0
    %13 = vsyncpa [#allocation5], 0
    %s14 = scalar_lea.sflag [#allocation5], 1
    %15 = vsyncpa %s14, 0
    loop: start=0, step=1, limit=4
    $region2: #{tpu_custom_call.1} parent=1 // loop_pre_header
      _
    $region3: #{tpu_custom_call.1} parent=1 // loop_header
      %s17 = sphi 0, %s21
      %p18 = scmp.ge.s32.totalorder %s17, 4
      %s24 = sphi 0, %s43
      %s25 = sphi 0, %s39
      %s26 = sphi 0, %s35
      %s27 = sphi 0, %s24
      %s28 = sphi 0, %s25
      %s29 = sphi 0, %s26
      %s30 = sphi 0, %s27
      %s31 = sphi 0, %s28
      %s32 = sphi 0, %s29
      %s50 = sphi 0, %s52
      %s53 = sphi 0, %s50
      %s54 = sphi 0, %s53
      %s70 = sphi 0, %s54
      %s80 = sphi 0, %s82
      %s83 = sphi 0, %s80
      %s84 = sphi 0, %s83
      %s100 = sphi 0, %s84
      %s108 = sphi 0, %s110
      %s111 = sphi 0, %s108
      %s112 = sphi 0, %s111
      %s128 = sphi 0, %s112
    $region4: #{tpu_custom_call.1} parent=1 // loop_header_branch
      %20 = sbr.rel (%p18) target = $region8
    $region5: #{tpu_custom_call.1} parent=1 // loop_body
      %s22 = ssub.s32 %s17, 1
      %s23 = ssub.s32 %s17, 2
      %s33 = sadd.s32 1, %s26
      %p34 = scmp.ge.s32.totalorder %s33, 1
      %s35 = scalar_select %p34, 0, %s33
      %s36 = sadd.s32 1, %s25
      %s37 = scalar_select %p34, %s36, %s25
      %p38 = scmp.ge.s32.totalorder %s37, 1
      %s39 = scalar_select %p38, 0, %s37
      %s40 = sadd.s32 1, %s24
      %s41 = scalar_select %p38, %s40, %s24
      %p42 = scmp.ge.s32.totalorder %s41, 2
      %s43 = scalar_select %p42, 0, %s41
      %s44 = sadd.s32 %s25, %s26
      %s45 = sadd.s32 %s39, %s35
      %s46 = ssub.s32 %s24, %s43
      %s47 = ssub.s32 %s44, %s45
      %s48 = sor.u32 %s46, %s47
      %p49 = scmp.eq.s32.totalorder %s48, 0
      %s51 = sadd.s32 %s50, 1
      %s52 = scalar_select %p49, %s50, %s51
      %p55 = pneg %p49
      %p56 = scmp.eq.s32.totalorder %s17, 1
      %p57 = por %p55, %p56
      %p58 = scmp.ne.s32.totalorder %s50, %s53
      %p59 = scmp.eq.s32.totalorder %s17, 0
      %p60 = por %p58, %p59
      %p61 = scmp.ne.s32.totalorder %s50, %s53
      %p62 = scmp.eq.s32.totalorder %s22, 1
      %p63 = por %p61, %p62
      %p64 = scmp.ne.s32.totalorder %s53, %s54
      %p65 = scmp.eq.s32.totalorder %s22, 0
      %p66 = por %p64, %p65
      %p67 = scmp.ne.s32.totalorder %s53, %s54
      %p68 = scmp.eq.s32.totalorder %s23, 1
      %p69 = por %p67, %p68
      %p71 = scmp.ne.s32.totalorder %s54, %s70
      %p72 = scmp.eq.s32.totalorder %s23, 0
      %p73 = por %p71, %p72
      %s74 = sadd.s32 %s25, %s26
      %s75 = sadd.s32 %s39, %s35
      %s76 = ssub.s32 %s24, %s43
      %s77 = ssub.s32 %s74, %s75
      %s78 = sor.u32 %s76, %s77
      %p79 = scmp.eq.s32.totalorder %s78, 0
      %s81 = sadd.s32 %s80, 1
      %s82 = scalar_select %p79, %s80, %s81
      %p85 = pneg %p79
      %p86 = scmp.eq.s32.totalorder %s17, 1
      %p87 = por %p85, %p86
      %p88 = scmp.ne.s32.totalorder %s80, %s83
      %p89 = scmp.eq.s32.totalorder %s17, 0
      %p90 = por %p88, %p89
      %p91 = scmp.ne.s32.totalorder %s80, %s83
      %p92 = scmp.eq.s32.totalorder %s22, 1
      %p93 = por %p91, %p92
      %p94 = scmp.ne.s32.totalorder %s83, %s84
      %p95 = scmp.eq.s32.totalorder %s22, 0
      %p96 = por %p94, %p95
      %p97 = scmp.ne.s32.totalorder %s83, %s84
      %p98 = scmp.eq.s32.totalorder %s23, 1
      %p99 = por %p97, %p98
      %p101 = scmp.ne.s32.totalorder %s84, %s100
      %p102 = scmp.eq.s32.totalorder %s23, 0
      %p103 = por %p101, %p102
      %s104 = ssub.s32 %s24, %s43
      %s105 = ssub.s32 %s25, %s39
      %s106 = sor.u32 %s104, %s105
      %p107 = scmp.eq.s32.totalorder %s106, 0
      %s109 = sadd.s32 %s108, 1
      %s110 = scalar_select %p107, %s108, %s109
      %p113 = pneg %p107
      %p114 = scmp.eq.s32.totalorder %s17, 1
      %p115 = por %p113, %p114
      %p116 = scmp.ne.s32.totalorder %s108, %s111
      %p117 = scmp.eq.s32.totalorder %s17, 0
      %p118 = por %p116, %p117
      %p119 = scmp.ne.s32.totalorder %s108, %s111
      %p120 = scmp.eq.s32.totalorder %s22, 1
      %p121 = por %p119, %p120
      %p122 = scmp.ne.s32.totalorder %s111, %s112
      %p123 = scmp.eq.s32.totalorder %s22, 0
      %p124 = por %p122, %p123
      %p125 = scmp.ne.s32.totalorder %s111, %s112
      %p126 = scmp.eq.s32.totalorder %s23, 1
      %p127 = por %p125, %p126
      %p129 = scmp.ne.s32.totalorder %s112, %s128
      %p130 = scmp.eq.s32.totalorder %s23, 0
      %p131 = por %p129, %p130
      %p132 = scmp.le.s32.totalorder 1, %s17
      %p133 = scmp.lt.s32.totalorder %s17, 3
      %p134 = pnand %p132, %p133
      %p135 = pneg %p134
      // Predicated region
      $region9: #{tpu_custom_call.1} parent=5 // pred_check
        _
      $region10: #{tpu_custom_call.1} parent=5 // pred_check_branch
        %137 = sbr.rel (%p134) target = $region12
      $region11: #{tpu_custom_call.1} parent=5 // pred_region
        %s138 = ssub.s32 %s17, 1
      $region12: #{tpu_custom_call.1} parent=5 // pred_fallthru
        _
      %p139 = scmp.lt.s32.totalorder %s17, 2
      // Predicated region
      $region13: #{tpu_custom_call.1} parent=5 // pred_check
        %p140 = pneg %p139
      $region14: #{tpu_custom_call.1} parent=5 // pred_check_branch
        %142 = sbr.rel (%p140) target = $region16
      $region15: #{tpu_custom_call.1} parent=5 // pred_region
        // Predicated region
        $region17: #{tpu_custom_call.1} parent=15 // pred_check
          %p143 = pneg %p60
        $region18: #{tpu_custom_call.1} parent=15 // pred_check_branch
          %145 = sbr.rel (%p143) target = $region20
        $region19: #{tpu_custom_call.1} parent=15 // pred_region
          %s146 = sand.u32 %s50, 1
          %s147 = scalar_lea.sflag [#allocation4], %s146
          %s148 = sand.u32 %s50, 1
          %s149 = smul.addr %s148, 8
          %s150 = scalar_lea.vmem [#allocation3], %s149
          %s151 = sadd.s32 %s25, %s26
          %s152 = smul.u32 2, %s151
          %s154 = ssub.s32 128, 128
          %155 = vsyncadd %s147, %s154
          %s156 = smul.addr %s24, 2
          %s157 = sadd.s32 %s152, %s156
          %s158 = smul.addr %s157, 64
          %s159 = scalar_lea.hbm %s0, %s158
          %s161 = sshll.u32 %s150, 4
          %s162 = int_to_ptr.vmem [resolvable:$true] %s161
          %164 = dma.hbm_to_vmem [thread:$0]  %s159, 128, %s162, %s147
        $region20: #{tpu_custom_call.1} parent=15 // pred_fallthru
          _
        // Predicated region
        $region21: #{tpu_custom_call.1} parent=15 // pred_check
          %p165 = pneg %p90
        $region22: #{tpu_custom_call.1} parent=15 // pred_check_branch
          %167 = sbr.rel (%p165) target = $region24
        $region23: #{tpu_custom_call.1} parent=15 // pred_region
          %s168 = sand.u32 %s80, 1
          %s169 = scalar_lea.sflag [#allocation7], %s168
          %s170 = sand.u32 %s80, 1
          %s171 = smul.addr %s170, 2
          %s172 = scalar_lea.vmem [#allocation6], %s171
          %s173 = sadd.s32 %s25, %s26
          %s174 = smul.u32 2, %s173
          %s176 = ssub.s32 32, 32
          %177 = vsyncadd %s169, %s176
          %s178 = smul.addr %s24, 2
          %s179 = sadd.s32 %s174, %s178
          %s180 = smul.addr %s179, 16
          %s181 = scalar_lea.hbm %s1, %s180
          %s183 = sshll.u32 %s172, 4
          %s184 = int_to_ptr.vmem [resolvable:$true] %s183
          %186 = dma.hbm_to_vmem [thread:$0]  %s181, 32, %s184, %s169
        $region24: #{tpu_custom_call.1} parent=15 // pred_fallthru
          _
      $region16: #{tpu_custom_call.1} parent=5 // pred_fallthru
        _
      %p187 = scmp.le.s32.totalorder 1, %s17
      %p188 = scmp.lt.s32.totalorder %s17, 3
      %p189 = pnand %p187, %p188
      %p190 = pneg %p189
      // Predicated region
      $region25: #{tpu_custom_call.1} parent=5 // pred_check
        _
      $region26: #{tpu_custom_call.1} parent=5 // pred_check_branch
        %192 = sbr.rel (%p189) target = $region28
      $region27: #{tpu_custom_call.1} parent=5 // pred_region
        %s193 = ssub.s32 %s17, 1
        %s194 = sand.u32 %s53, 1
        %s195 = scalar_lea.sflag [#allocation4], %s194
        %s196 = sand.u32 %s53, 1
        %s197 = smul.addr %s196, 8
        %s198 = scalar_lea.vmem [#allocation3], %s197
        // Predicated region
        $region29: #{tpu_custom_call.1} parent=27 // pred_check
          %p199 = pneg %p66
        $region30: #{tpu_custom_call.1} parent=27 // pred_check_branch
          %201 = sbr.rel (%p199) target = $region32
        $region31: #{tpu_custom_call.1} parent=27 // pred_region
          %202 = dma.done %s195, 128
        $region32: #{tpu_custom_call.1} parent=27 // pred_fallthru
          _
        %s203 = sand.u32 %s83, 1
        %s204 = scalar_lea.sflag [#allocation7], %s203
        %s205 = sand.u32 %s83, 1
        %s206 = smul.addr %s205, 2
        %s207 = scalar_lea.vmem [#allocation6], %s206
        // Predicated region
        $region33: #{tpu_custom_call.1} parent=27 // pred_check
          %p208 = pneg %p96
        $region34: #{tpu_custom_call.1} parent=27 // pred_check_branch
          %210 = sbr.rel (%p208) target = $region36
        $region35: #{tpu_custom_call.1} parent=27 // pred_region
          %211 = dma.done %s204, 32
        $region36: #{tpu_custom_call.1} parent=27 // pred_fallthru
          _
        %s212 = sand.u32 %s53, 1
        %s213 = scalar_lea.sflag [#allocation4], %s212
        %s214 = sand.u32 %s53, 1
        %s215 = smul.addr %s214, 8
        %s216 = scalar_lea.vmem [#allocation3], %s215
        %p217 = pneg %p66
        %p218 = pneg %p63
        %s219 = sand.u32 %s83, 1
        %s220 = scalar_lea.sflag [#allocation7], %s219
        %s221 = sand.u32 %s83, 1
        %s222 = smul.addr %s221, 2
        %s223 = scalar_lea.vmem [#allocation6], %s222
        %p224 = pneg %p96
        %p225 = pneg %p93
        %p226 = pneg %p124
        %p227 = pneg %p121
        %s228 = sand.u32 %s111, 1
        %s229 = scalar_lea.sflag [#allocation5], %s228
        %s230 = sand.u32 %s111, 1
        %s231 = smul.addr %s230, 4
        %s232 = scalar_lea.vmem [#allocation8], %s231
        %s233 = sadd.s32 %s28, %s29
        %s234 = smul.u32 2, %s233
        %s235 = sadd.s32 %s28, %s29
        %s236 = smul.u32 2, %s235
        %p237 = scmp.eq.s32.totalorder %s29, 0
        // Predicated region
        $region37: #{tpu_custom_call.1} parent=27 // pred_check
          %p238 = pneg %p237
        $region38: #{tpu_custom_call.1} parent=27 // pred_check_branch
          %240 = sbr.rel (%p238) target = $region40
        $region39: #{tpu_custom_call.1} parent=27 // pred_region
          %vm241 = vcmask 27648
          %242 = vst.msk [vmem:[#allocation2] sm:$0xf] %vm241, 0.0
        $region40: #{tpu_custom_call.1} parent=27 // pred_fallthru
          _
        %v243 = vld [vmem:[%s198] sm:$0xff]
        %v244 = vld [vmem:[%s207] sm:$0x3]
        %vm245 = vcmp.ne.s32.totalorder %v244, 255
        %v246 = vsel %vm245, 1, 0
        %v247 = vcvt.s32.f32 %v246
        %v248 = vlaneseq
        %v249 = vshrl.u32 %v248, 7
        %v250 = vlaneseq
        %v251 = vshrl.u32 %v250, 7
        %v252 = vsub.s32 0, %v251
        %v253 = vrot.slane %v244, %v252
        %v254 = vlaneseq
        %v255 = vshrl.u32 %v254, 7
        %v256 = vsub.s32 1, %v255
        %v257 = vrot.slane %v244, %v256
        %vm258 = vcmp.eq.s32.totalorder %v249, %v253
        %vm259 = vcmp.eq.s32.totalorder %v249, %v257
        %v261 = vcombine.high %v243, %v243
        %vm263 = vcmask 1043456
        %v264 = vsel %vm263, %v243, -inf
        %v265 = vrot.slane %v264, 4
        %v266 = vmax.f32 %v264, %v265
        %v267 = vrot.slane %v266, 2
        %v268 = vmax.f32 %v266, %v267
        %v269 = vrot.slane %v268, 1
        %v270 = vmax.f32 %v268, %v269
        %v271 = vsel %vm263, %v261, -inf
        %v272 = vrot.slane %v271, 4
        %v273 = vmax.f32 %v271, %v272
        %v274 = vrot.slane %v273, 2
        %v275 = vmax.f32 %v273, %v274
        %v276 = vrot.slane %v275, 1
        %v277 = vmax.f32 %v275, %v276
        %v280 = vcombine.low %v270, %v277
        %v282 = vsub.f32 %v243, %v280
        %v283 = vmul.f32 %v282, 1.442695
        %v284 = vpow.pop %v283
        %v286 = vcombine.high %v284, %v284
        %v288 = vsel %vm263, %v284, 0.0
        %v289 = vrot.slane %v288, 4
        %v290 = vadd.f32 %v288, %v289
        %v291 = vrot.slane %v290, 2
        %v292 = vadd.f32 %v290, %v291
        %v293 = vrot.slane %v292, 1
        %v294 = vadd.f32 %v292, %v293
        %v295 = vsel %vm263, %v286, 0.0
        %v296 = vrot.slane %v295, 4
        %v297 = vadd.f32 %v295, %v296
        %v298 = vrot.slane %v297, 2
        %v299 = vadd.f32 %v297, %v298
        %v300 = vrot.slane %v299, 1
        %v301 = vadd.f32 %v299, %v300
        %v302 = vrcp.pop %v294
        %v303 = vrcp.pop %v301
        %v304 = vmul.f32 %v294, %v302
        %v305 = vmul.f32 %v301, %v303
        %v306 = vsub.f32 2.0, %v304
        %v307 = vsub.f32 2.0, %v305
        %v308 = vmul.f32 %v302, %v306
        %v309 = vmul.f32 %v303, %v307
        %v312 = vcombine.low %v308, %v309
        %v314 = vunpack.c.l.s4 1966171168
        %v315 = vunpack.c.0.s8 %v314
        %v316 = vlaneseq
        %v317 = vshrl.u32 %v316, 7
        %v318 = vsub.s32 %v315, %v317
        %v319 = vrot.slane %v312, %v318
        %v321 = vunpack.c.l.s4 1966171168
        %v322 = vunpack.c.0.s8 %v321
        %v323 = vlaneseq
        %v324 = vshrl.u32 %v323, 7
        %v325 = vsub.s32 %v322, %v324
        %v326 = vrot.slane %v319, %v325
        %v328 = vmul.f32 %v247, %v326
        %v330 = vlaneseq
        %v331 = vshrl.u32 %v330, 7
        %v332 = vsub.s32 0, %v331
        %v333 = vrot.slane %v328, %v332
        %v334 = vlaneseq
        %v335 = vshrl.u32 %v334, 7
        %v336 = vsub.s32 1, %v335
        %v337 = vrot.slane %v328, %v336
        %v338 = vcombine.low %v333, %v337
        %v340 = vmul.f32 %v284, %v338
        %v341 = vlog2.pop %v294
        %v342 = vmul.f32 %v341, 0.6931472
        %v343 = vlog2.pop %v301
        %v344 = vmul.f32 %v343, 0.6931472
        %v345 = vadd.f32 %v270, %v342
        %v346 = vadd.f32 %v277, %v344
        %v347 = vsel %vm258, %v243, 0.0
        %v348 = vsel %vm259, %v261, 0.0
        %v349 = vsel %vm263, %v347, 0.0
        %v350 = vrot.slane %v349, 4
        %v351 = vadd.f32 %v349, %v350
        %v352 = vrot.slane %v351, 2
        %v353 = vadd.f32 %v351, %v352
        %v354 = vrot.slane %v353, 1
        %v355 = vadd.f32 %v353, %v354
        %v356 = vsel %vm263, %v348, 0.0
        %v357 = vrot.slane %v356, 4
        %v358 = vadd.f32 %v356, %v357
        %v359 = vrot.slane %v358, 2
        %v360 = vadd.f32 %v358, %v359
        %v361 = vrot.slane %v360, 1
        %v362 = vadd.f32 %v360, %v361
        %v363 = vsub.f32 %v345, %v355
        %v364 = vsub.f32 %v346, %v362
        %v366 = vlaneseq
        %v367 = vshrl.u32 %v366, 7
        %v368 = vsub.s32 0, %v367
        %v369 = vrot.slane %v247, %v368
        %v370 = vlaneseq
        %v371 = vshrl.u32 %v370, 7
        %v372 = vsub.s32 1, %v371
        %v373 = vrot.slane %v247, %v372
        %v376 = vmul.f32 %v363, %v369
        %v377 = vmul.f32 %v364, %v373
        %v379 = vcombine.high %v340, %v340
        %v381 = vsel %vm258, %v340, 0.0
        %v382 = vsel %vm259, %v379, 0.0
        %v383 = vsel %vm263, %v381, 0.0
        %v384 = vsel %vm263, %v382, 0.0
        %v385 = vadd.f32 %v383, %v384
        %386 = vadd.xlane.f32.xlu0 %v385
        %v387 = vpop.xlane.xlu0 %386
        %v388 = vsel %vm263, %v340, 0.0
        %v389 = vsel %vm263, %v379, 0.0
        %v390 = vadd.f32 %v388, %v389
        %391 = vadd.xlane.f32.xlu0 %v390
        %v392 = vpop.xlane.xlu0 %391
        %v393 = vsel %vm258, %v369, 0.0
        %v394 = vsel %vm259, %v373, 0.0
        %v395 = vsel %vm263, %v393, 0.0
        %v396 = vsel %vm263, %v394, 0.0
        %v397 = vadd.f32 %v395, %v396
        %398 = vadd.xlane.f32.xlu0 %v397
        %v399 = vpop.xlane.xlu0 %398
        %vm400 = vcmask 1040384
        %v401 = vsel %vm400, %v376, 0.0
        %v402 = vsel %vm400, %v377, 0.0
        %v403 = vadd.f32 %v401, %v402
        %404 = vadd.xlane.f32.xlu0 %v403
        %v405 = vpop.xlane.xlu0 %404
        %v406 = vld [vmem:[#allocation2] sm:$0xf]
        %v407 = vadd.f32 %v406, %v387
        %vm408 = vcmask 3072
        %409 = vst.msk [vmem:[#allocation2] sm:$0xf] %vm408, %v407
        %v410 = vld [vmem:[#allocation2] sm:$0xf]
        %v411 = vadd.f32 %v410, %v392
        %vm412 = vcmask 11272
        %413 = vst.msk [vmem:[#allocation2] sm:$0xf] %vm412, %v411
        %v414 = vld [vmem:[#allocation2] sm:$0xf]
        %v415 = vadd.f32 %v414, %v399
        %vm416 = vcmask 19472
        %417 = vst.msk [vmem:[#allocation2] sm:$0xf] %vm416, %v415
        %v418 = vld [vmem:[#allocation2] sm:$0x1]
        %v419 = vadd.f32 %v418, %v405
        %vm420 = vcmask 24600
        %421 = vst.msk [vmem:[#allocation2] sm:$0x1] %vm420, %v419
        // Predicated region
        $region41: #{tpu_custom_call.1} parent=27 // pred_check
          %p422 = pneg %p237
        $region42: #{tpu_custom_call.1} parent=27 // pred_check_branch
          %424 = sbr.rel (%p422) target = $region44
        $region43: #{tpu_custom_call.1} parent=27 // pred_region
          %v425 = vld [vmem:[#allocation2] sm:$0xf]
          %vm426 = vcmask 27648
          %427 = vst.msk [vmem:[%s232] sm:$0xf] %vm426, %v425
        $region44: #{tpu_custom_call.1} parent=27 // pred_fallthru
          _
        %s428 = sand.u32 %s111, 1
        %s429 = scalar_lea.sflag [#allocation5], %s428
        %s430 = sand.u32 %s111, 1
        %s431 = smul.addr %s430, 4
        %s432 = scalar_lea.vmem [#allocation8], %s431
        // Predicated region
        $region45: #{tpu_custom_call.1} parent=27 // pred_check
          %p433 = pneg %p121
        $region46: #{tpu_custom_call.1} parent=27 // pred_check_branch
          %435 = sbr.rel (%p433) target = $region48
        $region47: #{tpu_custom_call.1} parent=27 // pred_region
          %s437 = ssub.s32 64, 64
          %438 = vsyncadd %s429, %s437
          %s439 = sadd.s32 %s28, %s27
          %s440 = smul.addr %s439, 64
          %s441 = scalar_lea.hbm %s2, %s440
          %s443 = sshll.u32 %s432, 4
          %s444 = int_to_ptr.vmem [resolvable:$true] %s443
          %446 = dma.vmem_to_hbm [thread:$0]  %s444, 64, %s441, %s429
        $region48: #{tpu_custom_call.1} parent=27 // pred_fallthru
          _
      $region28: #{tpu_custom_call.1} parent=5 // pred_fallthru
        _
      %p447 = scmp.le.s32.totalorder 2, %s17
      // Predicated region
      $region49: #{tpu_custom_call.1} parent=5 // pred_check
        %p448 = pneg %p447
      $region50: #{tpu_custom_call.1} parent=5 // pred_check_branch
        %450 = sbr.rel (%p448) target = $region52
      $region51: #{tpu_custom_call.1} parent=5 // pred_region
        %s451 = ssub.s32 %s17, 2
        // Predicated region
        $region53: #{tpu_custom_call.1} parent=51 // pred_check
          %p452 = pneg %p127
        $region54: #{tpu_custom_call.1} parent=51 // pred_check_branch
          %454 = sbr.rel (%p452) target = $region56
        $region55: #{tpu_custom_call.1} parent=51 // pred_region
          %s455 = sand.u32 %s112, 1
          %s456 = scalar_lea.sflag [#allocation5], %s455
          %s457 = sand.u32 %s112, 1
          %s458 = smul.addr %s457, 4
          %s459 = scalar_lea.vmem [#allocation8], %s458
          %460 = dma.done %s456, 64
        $region56: #{tpu_custom_call.1} parent=51 // pred_fallthru
          _
      $region52: #{tpu_custom_call.1} parent=5 // pred_fallthru
        _
    $region6: #{tpu_custom_call.1} parent=1 // loop_footer
      %s21 = sadd.s32 1, %s17
    $region7: #{tpu_custom_call.1} parent=1 // loop_footer_branch
      %16 = sbr.rel target = $region3
    $region8: #{tpu_custom_call.1} parent=1 // loop_exit
      _
    %461 = vsyncpa [#allocation4], 1
    %s462 = scalar_lea.sflag [#allocation4], 1
    %463 = vsyncpa %s462, 1
    %464 = vsyncpa [#allocation7], 1
    %s465 = scalar_lea.sflag [#allocation7], 1
    %466 = vsyncpa %s465, 1
    %467 = vsyncpa [#allocation5], 1
    %s468 = scalar_lea.sflag [#allocation5], 1
    %469 = vsyncpa %s468, 1

</llo_original>
